<compile_context>
chip_gen: v7x
topology: tpu7x:2x2x1
jax: 0.10.0
libtpu: 0.0.40
codegen_flags: <defaults>
</compile_context>

<pallas_src>
import functools

import jax
import jax.numpy as jnp
from jax import lax
from jax.experimental import pallas as pl
from jax.experimental.pallas import tpu as pltpu

# MXU operand dtype.  Elementwise gate/cell math and accumulation stay f32.
MATMUL_DTYPE = jnp.bfloat16


# ----------------------------- Pallas kernel -------------------------------
def _lstm_cell(xh, c_prev, w_ref, b_ref, hidden_dim):
    """Fused LSTM cell: gates = [x, h_prev] @ [[W_ih],[W_hh]] + (b_ih + b_hh)."""
    gates = (jnp.dot(xh.astype(w_ref.dtype), w_ref[...],
                     preferred_element_type=jnp.float32)
             + b_ref[...])                                   # [N, 4H] f32
    # Full-vreg nonlinearities (EUP has slack), then lane-slice i/f/g/o.
    sig = jax.nn.sigmoid(gates)
    tnh = jnp.tanh(gates)
    H = hidden_dim
    i = sig[:, 0 * H:1 * H]
    f = sig[:, 1 * H:2 * H]
    g = tnh[:, 2 * H:3 * H]
    o = sig[:, 3 * H:4 * H]
    c_new = f * c_prev + i * g                               # f32
    h_new = o * jnp.tanh(c_new)                              # f32
    return h_new, c_new


def decoder_kernel(tok_ref, h0_ref, c0_ref, emb_ref,
                   w0_ref, b0_ref, w1_ref, b1_ref, wfc_ref, bfc_ref,
                   pred_ref, hout_ref, cout_ref,
                   h_sc, c_sc, *, hidden_dim):
    """One decode timestep per grid iteration; weights resident, state in scratch.

    tok_ref : [1, N, 1] int32   token ids for this step
    h0/c0   : [L, N, H] f32     initial states (loaded once, constant index_map)
    emb     : [V, E]            embedding table (bf16, resident)
    w0      : [E+H, 4H], w1 : [2H, 4H]   fused [W_ih; W_hh]^T (bf16, resident)
    b0/b1   : [1, 4H] f32       b_ih + b_hh
    wfc     : [H, O] bf16, bfc : [1, O] f32
    pred    : [1, N, O] f32     per-step logits
    hout/cout : [L, N, H] f32   final states (written at last step; alias inputs)
    h_sc/c_sc : [L, N, H] f32   VMEM carry across the time grid
    """
    t = pl.program_id(0)
    H = hidden_dim
    N = pred_ref.shape[1]
    V = emb_ref.shape[0]

    @pl.when(t == 0)
    def _seed_state():
        h_sc[...] = h0_ref[...]
        c_sc[...] = c0_ref[...]

    h_prev0 = h_sc[0]
    c_prev0 = c_sc[0]
    h_prev1 = h_sc[1]
    c_prev1 = c_sc[1]

    # ---- in-kernel embedding lookup: one-hot(ids) @ table (MXU) ----
    ids = tok_ref[0]                                          # [N, 1] int32
    onehot = (ids == lax.broadcasted_iota(jnp.int32, (N, V), 1)).astype(emb_ref.dtype)
    emb = jnp.dot(onehot, emb_ref[...],
                  preferred_element_type=jnp.float32)         # [N, E] f32

    # layer 0 (fused ih/hh matmul)
    h0n, c0n = _lstm_cell(jnp.concatenate([emb, h_prev0], axis=-1),
                          c_prev0, w0_ref, b0_ref, H)
    # layer 1 (inter-layer dropout is identity in eval mode)
    h1n, c1n = _lstm_cell(jnp.concatenate([h0n, h_prev1], axis=-1),
                          c_prev1, w1_ref, b1_ref, H)

    h_sc[0] = h0n
    h_sc[1] = h1n
    c_sc[0] = c0n
    c_sc[1] = c1n

    # fc projection for this step
    pred_ref[0] = (jnp.dot(h1n.astype(wfc_ref.dtype), wfc_ref[...],
                           preferred_element_type=jnp.float32)
                   + bfc_ref[...])

    @pl.when(t == pl.num_programs(0) - 1)
    def _write_state():
        hout_ref[...] = h_sc[...]
        cout_ref[...] = c_sc[...]


# ------------------------------- Wrappers ------------------------------------
@functools.partial(jax.jit, donate_argnums=(1, 2))
def decoder_decode(tokens, hidden_state, cell_state, params):
    """Run T decode steps inside ONE pallas_call.

    tokens       : int32 [T, N]
    hidden_state : f32  [L, N, H]   (donated; output aliases it)
    cell_state   : f32  [L, N, H]   (donated; output aliases it)
    returns (predictions [T, N, O], hidden [L, N, H], cell [L, N, H])
    """
    T, N = tokens.shape
    L, _, H = hidden_state.shape
    V, E = params["embedding"].shape
    O = params["w_fc"].shape[1]

    tok3 = tokens.reshape(T, N, 1).astype(jnp.int32)

    grid_spec = pltpu.PrefetchScalarGridSpec(
        num_scalar_prefetch=0,
        grid=(T,),
        in_specs=[
            pl.BlockSpec((1, N, 1), lambda t: (t, 0, 0)),       # tokens (per step)
            pl.BlockSpec((L, N, H), lambda t: (0, 0, 0)),       # h_in   (resident)
            pl.BlockSpec((L, N, H), lambda t: (0, 0, 0)),       # c_in   (resident)
            pl.BlockSpec((V, E), lambda t: (0, 0)),             # embedding table
            pl.BlockSpec((E + H, 4 * H), lambda t: (0, 0)),     # fused W layer 0
            pl.BlockSpec((1, 4 * H), lambda t: (0, 0)),         # b0
            pl.BlockSpec((2 * H, 4 * H), lambda t: (0, 0)),     # fused W layer 1
            pl.BlockSpec((1, 4 * H), lambda t: (0, 0)),         # b1
            pl.BlockSpec((H, O), lambda t: (0, 0)),             # fc weight
            pl.BlockSpec((1, O), lambda t: (0, 0)),             # fc bias
        ],
        out_specs=(
            pl.BlockSpec((1, N, O), lambda t: (t, 0, 0)),       # per-step logits
            pl.BlockSpec((L, N, H), lambda t: (0, 0, 0)),       # final hidden
            pl.BlockSpec((L, N, H), lambda t: (0, 0, 0)),       # final cell
        ),
        scratch_shapes=[
            pltpu.VMEM((L, N, H), jnp.float32),                 # h carry
            pltpu.VMEM((L, N, H), jnp.float32),                 # c carry
        ],
    )

    pred, h_out, c_out = pl.pallas_call(
        functools.partial(decoder_kernel, hidden_dim=H),
        grid_spec=grid_spec,
        out_shape=(
            jax.ShapeDtypeStruct((T, N, O), jnp.float32),
            jax.ShapeDtypeStruct((L, N, H), jnp.float32),
            jax.ShapeDtypeStruct((L, N, H), jnp.float32),
        ),
        input_output_aliases={1: 1, 2: 2},                      # in-place h/c update
        compiler_params=pltpu.CompilerParams(
            dimension_semantics=("arbitrary",)),                # time axis carries state
    )(tok3, hidden_state, cell_state,
      params["embedding"], params["w0"], params["b0"],
      params["w1"], params["b1"], params["w_fc"], params["b_fc"])

    return pred, h_out, c_out


def decoder_forward(x_tokens, hidden_state, cell_state, params):
    """Exactly Decoder.forward(x, hidden_state, cell_state) in eval mode (T = 1)."""
    pred, h_out, c_out = decoder_decode(x_tokens[None, :], hidden_state,
                                        cell_state, params)
    return pred[0], h_out, c_out


# --------------------------- Parameter creation ------------------------------
def init_params(key, input_size, output_size, embedding_size, hidden_dim,
                matmul_dtype=MATMUL_DTYPE):
    """PyTorch-layout weights, then fused / transposed ONCE offline."""
    H, E, V, O = hidden_dim, embedding_size, input_size, output_size
    ks = jax.random.split(key, 11)
    scale = 1.0 / jnp.sqrt(H)

    def u(k, shape):
        return jax.random.uniform(k, shape, jnp.float32, -scale, scale)

    # raw PyTorch-shaped params
    w_ih0 = u(ks[0], (4 * H, E)); w_hh0 = u(ks[1], (4 * H, H))
    b_ih0 = u(ks[2], (4 * H,));   b_hh0 = u(ks[3], (4 * H,))
    w_ih1 = u(ks[4], (4 * H, H)); w_hh1 = u(ks[5], (4 * H, H))
    b_ih1 = u(ks[6], (4 * H,));   b_hh1 = u(ks[7], (4 * H,))
    w_fc  = u(ks[8], (O, H));     b_fc  = u(ks[9], (O,))
    emb   = jax.random.normal(ks[10], (V, E), jnp.float32)

    return {
        "embedding": emb.astype(matmul_dtype),                               # [V, E]
        # fused [W_ih ; W_hh]^T  ->  [E+H, 4H] / [2H, 4H]
        "w0": jnp.concatenate([w_ih0, w_hh0], axis=1).T.astype(matmul_dtype),
        "b0": (b_ih0 + b_hh0).reshape(1, 4 * H),                             # f32
        "w1": jnp.concatenate([w_ih1, w_hh1], axis=1).T.astype(matmul_dtype),
        "b1": (b_ih1 + b_hh1).reshape(1, 4 * H),                             # f32
        "w_fc": w_fc.T.astype(matmul_dtype),                                 # [H, O]
        "b_fc": b_fc.reshape(1, O),                                          # f32
    }


# ---------------------------------- Main -------------------------------------
if __name__ == "__main__":
    input_size = 64        # decoder-side vocab (== len(english.vocab) conceptually)
    output_size = 64
    embedding_size = 32
    hidden_dim = 32
    num_layers = 2
    batch = 8

    key = jax.random.PRNGKey(0)
    k_par, k_x, k_h, k_c = jax.random.split(key, 4)

    params = init_params(k_par, input_size, output_size, embedding_size, hidden_dim)

    # single-step forward (matches Decoder.forward: one word per batch element)
    x_tokens = jax.random.randint(k_x, (batch,), 0, input_size, dtype=jnp.int32)
    hidden_state = jax.random.normal(k_h, (num_layers, batch, hidden_dim), jnp.float32)
    cell_state = jax.random.normal(k_c, (num_layers, batch, hidden_dim), jnp.float32)

    pred, h_out, c_out = decoder_forward(x_tokens, hidden_state, cell_state, params)
    jax.block_until_ready((pred, h_out, c_out))

    assert pred.shape == (batch, output_size)
    assert h_out.shape == (num_layers, batch, hidden_dim)
    assert c_out.shape == (num_layers, batch, hidden_dim)
    assert bool(jnp.all(jnp.isfinite(pred)))

    # multi-step decode (teacher-forced token sequence) exercising the in-kernel
    # time loop with weights resident in VMEM across all steps.
    T = 4
    tok_seq = jax.random.randint(jax.random.PRNGKey(1), (T, batch), 0,
                                 input_size, dtype=jnp.int32)
    pred_seq, h2, c2 = decoder_decode(tok_seq, h_out, c_out, params)
    jax.block_until_ready((pred_seq, h2, c2))
    assert pred_seq.shape == (T, batch, output_size)
    assert bool(jnp.all(jnp.isfinite(pred_seq)))

    print("KERNEL_OK")
</pallas_src>

<mosaic_0001>
module attributes {stable_mosaic.version = 11 : i64} {
  func.func @decoder_kernel(%arg0: i32, %arg1: memref<1x8x1xi32, #tpu.memory_space<vmem>>, %arg2: memref<2x8x32xf32, #tpu.memory_space<vmem>>, %arg3: memref<2x8x32xf32, #tpu.memory_space<vmem>>, %arg4: memref<64x32xbf16, #tpu.memory_space<vmem>>, %arg5: memref<64x128xbf16, #tpu.memory_space<vmem>>, %arg6: memref<1x128xf32, #tpu.memory_space<vmem>>, %arg7: memref<64x128xbf16, #tpu.memory_space<vmem>>, %arg8: memref<1x128xf32, #tpu.memory_space<vmem>>, %arg9: memref<32x64xbf16, #tpu.memory_space<vmem>>, %arg10: memref<1x64xf32, #tpu.memory_space<vmem>>, %arg11: memref<1x8x64xf32, #tpu.memory_space<vmem>>, %arg12: memref<2x8x32xf32, #tpu.memory_space<vmem>>, %arg13: memref<2x8x32xf32, #tpu.memory_space<vmem>>, %arg14: memref<2x8x32xf32, #tpu.memory_space<vmem>>, %arg15: memref<2x8x32xf32, #tpu.memory_space<vmem>>) attributes {dimension_semantics = [#tpu.dimension_semantics<arbitrary>], iteration_bounds = array<i64: 1>, scalar_prefetch = 0 : i64, scratch_operands = 2 : i64, tpu.core_type = #tpu.core_type<tc>, window_params = [{transform_indices = @transform_0, window_bounds = array<i64: 1, 8, 1>}, {pipeline_mode = #tpu.pipeline_mode<synchronous>, transform_indices = @transform_1, window_bounds = array<i64: 2, 8, 32>}, {pipeline_mode = #tpu.pipeline_mode<synchronous>, transform_indices = @transform_2, window_bounds = array<i64: 2, 8, 32>}, {pipeline_mode = #tpu.pipeline_mode<synchronous>, transform_indices = @transform_3, window_bounds = array<i64: 64, 32>}, {pipeline_mode = #tpu.pipeline_mode<synchronous>, transform_indices = @transform_4, window_bounds = array<i64: 64, 128>}, {pipeline_mode = #tpu.pipeline_mode<synchronous>, transform_indices = @transform_5, window_bounds = array<i64: 1, 128>}, {pipeline_mode = #tpu.pipeline_mode<synchronous>, transform_indices = @transform_6, window_bounds = array<i64: 64, 128>}, {pipeline_mode = #tpu.pipeline_mode<synchronous>, transform_indices = @transform_7, window_bounds = array<i64: 1, 128>}, {pipeline_mode = #tpu.pipeline_mode<synchronous>, transform_indices = @transform_8, window_bounds = array<i64: 32, 64>}, {pipeline_mode = #tpu.pipeline_mode<synchronous>, transform_indices = @transform_9, window_bounds = array<i64: 1, 64>}, {transform_indices = @transform_10, window_bounds = array<i64: 1, 8, 64>}, {pipeline_mode = #tpu.pipeline_mode<synchronous>, transform_indices = @transform_11, window_bounds = array<i64: 2, 8, 32>}, {pipeline_mode = #tpu.pipeline_mode<synchronous>, transform_indices = @transform_12, window_bounds = array<i64: 2, 8, 32>}]} {
    %c0_i32 = arith.constant 0 : i32
    %0 = arith.cmpi eq, %arg0, %c0_i32 : i32
    %1 = arith.extui %0 : i1 to i32
    %c0_i32_0 = arith.constant 0 : i32
    %2 = arith.cmpi ne, %1, %c0_i32_0 : i32
    scf.if %2 {
      %c0_50 = arith.constant 0 : index
      %c0_51 = arith.constant 0 : index
      %c0_52 = arith.constant 0 : index
      %89 = vector.load %arg2[%c0_50, %c0_51, %c0_52] : memref<2x8x32xf32, #tpu.memory_space<vmem>>, vector<2x8x32xf32>
      %c0_53 = arith.constant 0 : index
      %c0_54 = arith.constant 0 : index
      %c0_55 = arith.constant 0 : index
      %90 = vector.load %arg14[%c0_53, %c0_54, %c0_55] : memref<2x8x32xf32, #tpu.memory_space<vmem>>, vector<2x8x32xf32>
      tpu.vector_store %arg14[%c0_53, %c0_54, %c0_55], %89 {strides = array<i32>} : memref<2x8x32xf32, #tpu.memory_space<vmem>>, vector<2x8x32xf32>,
      %c0_56 = arith.constant 0 : index
      %c0_57 = arith.constant 0 : index
      %c0_58 = arith.constant 0 : index
      %91 = vector.load %arg3[%c0_56, %c0_57, %c0_58] : memref<2x8x32xf32, #tpu.memory_space<vmem>>, vector<2x8x32xf32>
      %c0_59 = arith.constant 0 : index
      %c0_60 = arith.constant 0 : index
      %c0_61 = arith.constant 0 : index
      %92 = vector.load %arg15[%c0_59, %c0_60, %c0_61] : memref<2x8x32xf32, #tpu.memory_space<vmem>>, vector<2x8x32xf32>
      tpu.vector_store %arg15[%c0_59, %c0_60, %c0_61], %91 {strides = array<i32>} : memref<2x8x32xf32, #tpu.memory_space<vmem>>, vector<2x8x32xf32>,
    } else {
    }
    %c0 = arith.constant 0 : index
    %c0_1 = arith.constant 0 : index
    %c0_2 = arith.constant 0 : index
    %3 = vector.load %arg14[%c0, %c0_1, %c0_2] : memref<2x8x32xf32, #tpu.memory_space<vmem>>, vector<1x8x32xf32>
    %4 = vector.shape_cast %3 : vector<1x8x32xf32> to vector<8x32xf32>
    %c0_3 = arith.constant 0 : index
    %c0_4 = arith.constant 0 : index
    %c0_5 = arith.constant 0 : index
    %5 = vector.load %arg15[%c0_3, %c0_4, %c0_5] : memref<2x8x32xf32, #tpu.memory_space<vmem>>, vector<1x8x32xf32>
    %6 = vector.shape_cast %5 : vector<1x8x32xf32> to vector<8x32xf32>
    %c1 = arith.constant 1 : index
    %c0_6 = arith.constant 0 : index
    %c0_7 = arith.constant 0 : index
    %7 = vector.load %arg14[%c1, %c0_6, %c0_7] : memref<2x8x32xf32, #tpu.memory_space<vmem>>, vector<1x8x32xf32>
    %8 = vector.shape_cast %7 : vector<1x8x32xf32> to vector<8x32xf32>
    %c1_8 = arith.constant 1 : index
    %c0_9 = arith.constant 0 : index
    %c0_10 = arith.constant 0 : index
    %9 = vector.load %arg15[%c1_8, %c0_9, %c0_10] : memref<2x8x32xf32, #tpu.memory_space<vmem>>, vector<1x8x32xf32>
    %10 = vector.shape_cast %9 : vector<1x8x32xf32> to vector<8x32xf32>
    %c0_11 = arith.constant 0 : index
    %c0_12 = arith.constant 0 : index
    %c0_13 = arith.constant 0 : index
    %11 = vector.load %arg1[%c0_11, %c0_12, %c0_13] : memref<1x8x1xi32, #tpu.memory_space<vmem>>, vector<1x8x1xi32>
    %12 = vector.shape_cast %11 : vector<1x8x1xi32> to vector<8x1xi32>
    %13 = tpu.iota {dimensions = array<i32: 1>} : vector<8x64xi32>
    %14 = vector.broadcast %12 : vector<8x1xi32> to vector<8x64xi32>
    %15 = arith.cmpi eq, %14, %13 : vector<8x64xi32>
    %16 = arith.extui %15 : vector<8x64xi1> to vector<8x64xi32>
    %17 = arith.sitofp %16 : vector<8x64xi32> to vector<8x64xf32>
    %18 = arith.truncf %17 : vector<8x64xf32> to vector<8x64xbf16>
    %c0_14 = arith.constant 0 : index
    %c0_15 = arith.constant 0 : index
    %19 = vector.load %arg4[%c0_14, %c0_15] : memref<64x32xbf16, #tpu.memory_space<vmem>>, vector<64x32xbf16>
    %cst = arith.constant dense<0.000000e+00> : vector<8x32xf32>
    %20 = tpu.matmul %18, %19, %cst {dimension_numbers = #tpu.dot_dimension_numbers<[1], [0], [0], [1], [0, 0, 1, 1], [], []>} : vector<8x64xbf16>, vector<64x32xbf16>, vector<8x32xf32> -> vector<8x32xf32>
    %21 = tpu.concatenate %20, %4 in 1 : vector<8x32xf32>, vector<8x32xf32> -> vector<8x64xf32>
    %22 = arith.truncf %21 : vector<8x64xf32> to vector<8x64xbf16>
    %c0_16 = arith.constant 0 : index
    %c0_17 = arith.constant 0 : index
    %23 = vector.load %arg5[%c0_16, %c0_17] : memref<64x128xbf16, #tpu.memory_space<vmem>>, vector<64x128xbf16>
    %cst_18 = arith.constant dense<0.000000e+00> : vector<8x128xf32>
    %24 = tpu.matmul %22, %23, %cst_18 {dimension_numbers = #tpu.dot_dimension_numbers<[1], [0], [0], [1], [0, 0, 1, 1], [], []>} : vector<8x64xbf16>, vector<64x128xbf16>, vector<8x128xf32> -> vector<8x128xf32>
    %c0_19 = arith.constant 0 : index
    %c0_20 = arith.constant 0 : index
    %25 = vector.load %arg6[%c0_19, %c0_20] : memref<1x128xf32, #tpu.memory_space<vmem>>, vector<1x128xf32>
    %26 = vector.broadcast %25 : vector<1x128xf32> to vector<8x128xf32>
    %27 = arith.addf %24, %26 : vector<8x128xf32>
    %28 = arith.negf %27 : vector<8x128xf32>
    %29 = math.exp %28 : vector<8x128xf32>
    %cst_21 = arith.constant 1.000000e+00 : f32
    %30 = vector.broadcast %cst_21 : f32 to vector<8x128xf32>
    %31 = arith.addf %30, %29 : vector<8x128xf32>
    %32 = arith.divf %30, %31 : vector<8x128xf32>
    %33 = math.tanh %27 : vector<8x128xf32>
    %34 = vector.extract_strided_slice %32 {offsets = [0, 0], sizes = [8, 32], strides = [1, 1]} : vector<8x128xf32> to vector<8x32xf32>
    %35 = vector.extract_strided_slice %32 {offsets = [0, 32], sizes = [8, 32], strides = [1, 1]} : vector<8x128xf32> to vector<8x32xf32>
    %36 = vector.extract_strided_slice %33 {offsets = [0, 64], sizes = [8, 32], strides = [1, 1]} : vector<8x128xf32> to vector<8x32xf32>
    %37 = vector.extract_strided_slice %32 {offsets = [0, 96], sizes = [8, 32], strides = [1, 1]} : vector<8x128xf32> to vector<8x32xf32>
    %38 = arith.mulf %35, %6 : vector<8x32xf32>
    %39 = arith.mulf %34, %36 : vector<8x32xf32>
    %40 = arith.addf %38, %39 : vector<8x32xf32>
    %41 = math.tanh %40 : vector<8x32xf32>
    %42 = arith.mulf %37, %41 : vector<8x32xf32>
    %43 = tpu.concatenate %42, %8 in 1 : vector<8x32xf32>, vector<8x32xf32> -> vector<8x64xf32>
    %44 = arith.truncf %43 : vector<8x64xf32> to vector<8x64xbf16>
    %c0_22 = arith.constant 0 : index
    %c0_23 = arith.constant 0 : index
    %45 = vector.load %arg7[%c0_22, %c0_23] : memref<64x128xbf16, #tpu.memory_space<vmem>>, vector<64x128xbf16>
    %cst_24 = arith.constant dense<0.000000e+00> : vector<8x128xf32>
    %46 = tpu.matmul %44, %45, %cst_24 {dimension_numbers = #tpu.dot_dimension_numbers<[1], [0], [0], [1], [0, 0, 1, 1], [], []>} : vector<8x64xbf16>, vector<64x128xbf16>, vector<8x128xf32> -> vector<8x128xf32>
    %c0_25 = arith.constant 0 : index
    %c0_26 = arith.constant 0 : index
    %47 = vector.load %arg8[%c0_25, %c0_26] : memref<1x128xf32, #tpu.memory_space<vmem>>, vector<1x128xf32>
    %48 = vector.broadcast %47 : vector<1x128xf32> to vector<8x128xf32>
    %49 = arith.addf %46, %48 : vector<8x128xf32>
    %50 = arith.negf %49 : vector<8x128xf32>
    %51 = math.exp %50 : vector<8x128xf32>
    %cst_27 = arith.constant 1.000000e+00 : f32
    %52 = vector.broadcast %cst_27 : f32 to vector<8x128xf32>
    %53 = arith.addf %52, %51 : vector<8x128xf32>
    %54 = arith.divf %52, %53 : vector<8x128xf32>
    %55 = math.tanh %49 : vector<8x128xf32>
    %56 = vector.extract_strided_slice %54 {offsets = [0, 0], sizes = [8, 32], strides = [1, 1]} : vector<8x128xf32> to vector<8x32xf32>
    %57 = vector.extract_strided_slice %54 {offsets = [0, 32], sizes = [8, 32], strides = [1, 1]} : vector<8x128xf32> to vector<8x32xf32>
    %58 = vector.extract_strided_slice %55 {offsets = [0, 64], sizes = [8, 32], strides = [1, 1]} : vector<8x128xf32> to vector<8x32xf32>
    %59 = vector.extract_strided_slice %54 {offsets = [0, 96], sizes = [8, 32], strides = [1, 1]} : vector<8x128xf32> to vector<8x32xf32>
    %60 = arith.mulf %57, %10 : vector<8x32xf32>
    %61 = arith.mulf %56, %58 : vector<8x32xf32>
    %62 = arith.addf %60, %61 : vector<8x32xf32>
    %63 = math.tanh %62 : vector<8x32xf32>
    %64 = arith.mulf %59, %63 : vector<8x32xf32>
    %c0_28 = arith.constant 0 : index
    %c0_29 = arith.constant 0 : index
    %c0_30 = arith.constant 0 : index
    %65 = vector.load %arg14[%c0_28, %c0_29, %c0_30] : memref<2x8x32xf32, #tpu.memory_space<vmem>>, vector<1x8x32xf32>
    %66 = vector.shape_cast %65 : vector<1x8x32xf32> to vector<8x32xf32>
    %67 = vector.shape_cast %42 : vector<8x32xf32> to vector<1x8x32xf32>
    tpu.vector_store %arg14[%c0_28, %c0_29, %c0_30], %67 {strides = array<i32>} : memref<2x8x32xf32, #tpu.memory_space<vmem>>, vector<1x8x32xf32>,
    %c1_31 = arith.constant 1 : index
    %c0_32 = arith.constant 0 : index
    %c0_33 = arith.constant 0 : index
    %68 = vector.load %arg14[%c1_31, %c0_32, %c0_33] : memref<2x8x32xf32, #tpu.memory_space<vmem>>, vector<1x8x32xf32>
    %69 = vector.shape_cast %68 : vector<1x8x32xf32> to vector<8x32xf32>
    %70 = vector.shape_cast %64 : vector<8x32xf32> to vector<1x8x32xf32>
    tpu.vector_store %arg14[%c1_31, %c0_32, %c0_33], %70 {strides = array<i32>} : memref<2x8x32xf32, #tpu.memory_space<vmem>>, vector<1x8x32xf32>,
    %c0_34 = arith.constant 0 : index
    %c0_35 = arith.constant 0 : index
    %c0_36 = arith.constant 0 : index
    %71 = vector.load %arg15[%c0_34, %c0_35, %c0_36] : memref<2x8x32xf32, #tpu.memory_space<vmem>>, vector<1x8x32xf32>
    %72 = vector.shape_cast %71 : vector<1x8x32xf32> to vector<8x32xf32>
    %73 = vector.shape_cast %40 : vector<8x32xf32> to vector<1x8x32xf32>
    tpu.vector_store %arg15[%c0_34, %c0_35, %c0_36], %73 {strides = array<i32>} : memref<2x8x32xf32, #tpu.memory_space<vmem>>, vector<1x8x32xf32>,
    %c1_37 = arith.constant 1 : index
    %c0_38 = arith.constant 0 : index
    %c0_39 = arith.constant 0 : index
    %74 = vector.load %arg15[%c1_37, %c0_38, %c0_39] : memref<2x8x32xf32, #tpu.memory_space<vmem>>, vector<1x8x32xf32>
    %75 = vector.shape_cast %74 : vector<1x8x32xf32> to vector<8x32xf32>
    %76 = vector.shape_cast %62 : vector<8x32xf32> to vector<1x8x32xf32>
    tpu.vector_store %arg15[%c1_37, %c0_38, %c0_39], %76 {strides = array<i32>} : memref<2x8x32xf32, #tpu.memory_space<vmem>>, vector<1x8x32xf32>,
    %77 = arith.truncf %64 : vector<8x32xf32> to vector<8x32xbf16>
    %c0_40 = arith.constant 0 : index
    %c0_41 = arith.constant 0 : index
    %78 = vector.load %arg9[%c0_40, %c0_41] : memref<32x64xbf16, #tpu.memory_space<vmem>>, vector<32x64xbf16>
    %cst_42 = arith.constant dense<0.000000e+00> : vector<8x64xf32>
    %79 = tpu.matmul %77, %78, %cst_42 {dimension_numbers = #tpu.dot_dimension_numbers<[1], [0], [0], [1], [0, 0, 1, 1], [], []>} : vector<8x32xbf16>, vector<32x64xbf16>, vector<8x64xf32> -> vector<8x64xf32>
    %c0_43 = arith.constant 0 : index
    %c0_44 = arith.constant 0 : index
    %80 = vector.load %arg10[%c0_43, %c0_44] : memref<1x64xf32, #tpu.memory_space<vmem>>, vector<1x64xf32>
    %81 = vector.broadcast %80 : vector<1x64xf32> to vector<8x64xf32>
    %82 = arith.addf %79, %81 : vector<8x64xf32>
    %c0_45 = arith.constant 0 : index
    %c0_46 = arith.constant 0 : index
    %c0_47 = arith.constant 0 : index
    %83 = vector.load %arg11[%c0_45, %c0_46, %c0_47] : memref<1x8x64xf32, #tpu.memory_space<vmem>>, vector<1x8x64xf32>
    %84 = vector.shape_cast %83 : vector<1x8x64xf32> to vector<8x64xf32>
    %85 = vector.shape_cast %82 : vector<8x64xf32> to vector<1x8x64xf32>
    tpu.vector_store %arg11[%c0_45, %c0_46, %c0_47], %85 {strides = array<i32>} : memref<1x8x64xf32, #tpu.memory_space<vmem>>, vector<1x8x64xf32>,
    %c0_i32_48 = arith.constant 0 : i32
    %86 = arith.cmpi eq, %arg0, %c0_i32_48 : i32
    %87 = arith.extui %86 : i1 to i32
    %c0_i32_49 = arith.constant 0 : i32
    %88 = arith.cmpi ne, %87, %c0_i32_49 : i32
    scf.if %88 {
      %c0_50 = arith.constant 0 : index
      %c0_51 = arith.constant 0 : index
      %c0_52 = arith.constant 0 : index
      %89 = vector.load %arg14[%c0_50, %c0_51, %c0_52] : memref<2x8x32xf32, #tpu.memory_space<vmem>>, vector<2x8x32xf32>
      %c0_53 = arith.constant 0 : index
      %c0_54 = arith.constant 0 : index
      %c0_55 = arith.constant 0 : index
      %90 = vector.load %arg12[%c0_53, %c0_54, %c0_55] : memref<2x8x32xf32, #tpu.memory_space<vmem>>, vector<2x8x32xf32>
      tpu.vector_store %arg12[%c0_53, %c0_54, %c0_55], %89 {strides = array<i32>} : memref<2x8x32xf32, #tpu.memory_space<vmem>>, vector<2x8x32xf32>,
      %c0_56 = arith.constant 0 : index
      %c0_57 = arith.constant 0 : index
      %c0_58 = arith.constant 0 : index
      %91 = vector.load %arg15[%c0_56, %c0_57, %c0_58] : memref<2x8x32xf32, #tpu.memory_space<vmem>>, vector<2x8x32xf32>
      %c0_59 = arith.constant 0 : index
      %c0_60 = arith.constant 0 : index
      %c0_61 = arith.constant 0 : index
      %92 = vector.load %arg13[%c0_59, %c0_60, %c0_61] : memref<2x8x32xf32, #tpu.memory_space<vmem>>, vector<2x8x32xf32>
      tpu.vector_store %arg13[%c0_59, %c0_60, %c0_61], %91 {strides = array<i32>} : memref<2x8x32xf32, #tpu.memory_space<vmem>>, vector<2x8x32xf32>,
    } else {
    }
    return
  }
  func.func @transform_0(%arg0: i32) -> (i32, i32, i32) {
    %c0_i32 = arith.constant 0 : i32
    %c0_i32_0 = arith.constant 0 : i32
    %c0_i32_1 = arith.constant 0 : i32
    return %arg0, %c0_i32, %c0_i32_0 : i32, i32, i32
  }
  func.func @transform_1(%arg0: i32) -> (i32, i32, i32) {
    %c0_i32 = arith.constant 0 : i32
    %c0_i32_0 = arith.constant 0 : i32
    %c0_i32_1 = arith.constant 0 : i32
    %c0_i32_2 = arith.constant 0 : i32
    return %c0_i32, %c0_i32_0, %c0_i32_1 : i32, i32, i32
  }
  func.func @transform_2(%arg0: i32) -> (i32, i32, i32) {
    %c0_i32 = arith.constant 0 : i32
    %c0_i32_0 = arith.constant 0 : i32
    %c0_i32_1 = arith.constant 0 : i32
    %c0_i32_2 = arith.constant 0 : i32
    return %c0_i32, %c0_i32_0, %c0_i32_1 : i32, i32, i32
  }
  func.func @transform_3(%arg0: i32) -> (i32, i32) {
    %c0_i32 = arith.constant 0 : i32
    %c0_i32_0 = arith.constant 0 : i32
    %c0_i32_1 = arith.constant 0 : i32
    return %c0_i32, %c0_i32_0 : i32, i32
  }
  func.func @transform_4(%arg0: i32) -> (i32, i32) {
    %c0_i32 = arith.constant 0 : i32
    %c0_i32_0 = arith.constant 0 : i32
    %c0_i32_1 = arith.constant 0 : i32
    return %c0_i32, %c0_i32_0 : i32, i32
  }
  func.func @transform_5(%arg0: i32) -> (i32, i32) {
    %c0_i32 = arith.constant 0 : i32
    %c0_i32_0 = arith.constant 0 : i32
    %c0_i32_1 = arith.constant 0 : i32
    return %c0_i32, %c0_i32_0 : i32, i32
  }
  func.func @transform_6(%arg0: i32) -> (i32, i32) {
    %c0_i32 = arith.constant 0 : i32
    %c0_i32_0 = arith.constant 0 : i32
    %c0_i32_1 = arith.constant 0 : i32
    return %c0_i32, %c0_i32_0 : i32, i32
  }
  func.func @transform_7(%arg0: i32) -> (i32, i32) {
    %c0_i32 = arith.constant 0 : i32
    %c0_i32_0 = arith.constant 0 : i32
    %c0_i32_1 = arith.constant 0 : i32
    return %c0_i32, %c0_i32_0 : i32, i32
  }
  func.func @transform_8(%arg0: i32) -> (i32, i32) {
    %c0_i32 = arith.constant 0 : i32
    %c0_i32_0 = arith.constant 0 : i32
    %c0_i32_1 = arith.constant 0 : i32
    return %c0_i32, %c0_i32_0 : i32, i32
  }
  func.func @transform_9(%arg0: i32) -> (i32, i32) {
    %c0_i32 = arith.constant 0 : i32
    %c0_i32_0 = arith.constant 0 : i32
    %c0_i32_1 = arith.constant 0 : i32
    return %c0_i32, %c0_i32_0 : i32, i32
  }
  func.func @transform_10(%arg0: i32) -> (i32, i32, i32) {
    %c0_i32 = arith.constant 0 : i32
    %c0_i32_0 = arith.constant 0 : i32
    %c0_i32_1 = arith.constant 0 : i32
    return %arg0, %c0_i32, %c0_i32_0 : i32, i32, i32
  }
  func.func @transform_11(%arg0: i32) -> (i32, i32, i32) {
    %c0_i32 = arith.constant 0 : i32
    %c0_i32_0 = arith.constant 0 : i32
    %c0_i32_1 = arith.constant 0 : i32
    %c0_i32_2 = arith.constant 0 : i32
    return %c0_i32, %c0_i32_0, %c0_i32_1 : i32, i32, i32
  }
  func.func @transform_12(%arg0: i32) -> (i32, i32, i32) {
    %c0_i32 = arith.constant 0 : i32
    %c0_i32_0 = arith.constant 0 : i32
    %c0_i32_1 = arith.constant 0 : i32
    %c0_i32_2 = arith.constant 0 : i32
    return %c0_i32, %c0_i32_0, %c0_i32_1 : i32, i32, i32
  }
}

</mosaic_0001>

<llo_original>
// kernel: decoder_decode.1
$region0: #{decoder_decode.1}
  #allocation0 [shape = 'u32[]', space=smem, size = 0x4, offset = 0x4, fixed_abs, tag = 'smem constant byte address 0x4 - core index']
  #allocation1 [shape = 'u32[144,128]{1,0:T(1,128)}', space=vmem, size = 0x12000, scoped, tag = 'internal scratch']
  #allocation2 [shape = 'f32[2,8,32]{2,1,0:T(8,128)}', space=vmem, size = 0x2000, scoped, tag = 'scratch operand']
  #allocation3 [shape = 'f32[2,8,32]{2,1,0:T(8,128)}', space=vmem, size = 0x2000, scoped, tag = 'scratch operand']
  %s0 = inlined_call_operand.vmem [shape: s32[1,8,1], index: 0, kind: input, shape index: {}]
  %s1 = inlined_call_operand.hbm [shape: f32[2,8,32], index: 1, kind: input, shape index: {}, may-alias: {1,11}]
  %s2 = inlined_call_operand.hbm [shape: f32[2,8,32], index: 2, kind: input, shape index: {}, may-alias: {2,12}]
  %s3 = inlined_call_operand.vmem [shape: bf16[64,32], index: 3, kind: input, shape index: {}]
  %s4 = inlined_call_operand.vmem [shape: bf16[64,128], index: 4, kind: input, shape index: {}]
  %s5 = inlined_call_operand.vmem [shape: f32[1,128], index: 5, kind: input, shape index: {}]
  %s6 = inlined_call_operand.vmem [shape: bf16[64,128], index: 6, kind: input, shape index: {}]
  %s7 = inlined_call_operand.vmem [shape: f32[1,128], index: 7, kind: input, shape index: {}]
  %s8 = inlined_call_operand.hbm [shape: bf16[32,64], index: 8, kind: input, shape index: {}]
  %s9 = inlined_call_operand.vmem [shape: f32[1,64], index: 9, kind: input, shape index: {}]
  %s10 = inlined_call_operand.hbm [shape: f32[1,8,64], index: 10, kind: output, shape index: {0}]
  %s11 = inlined_call_operand.hbm [shape: f32[2,8,32], index: 11, kind: output, shape index: {1}, may-alias: {1,11}]
  %s12 = inlined_call_operand.hbm [shape: f32[2,8,32], index: 12, kind: output, shape index: {2}, may-alias: {2,12}]
  %13 = xla_tuple %s10, %s11, %s12
  %s14 = sld [smem:[#allocation0]]
  $region86: #{decoder_decode.1} parent=0
    _
  %s16 = ssub.s32 1, %s14
  %s17 = scalar_select 0, %s16, %s14
  $region1: #{decoder_decode.1} parent=0
    #allocation4 [shape = 'u8[8192]{0}', space=vmem, size = 0x2000, scoped, tag = 'input window, operand 1, single buffered']
    #allocation5 [shape = 's32[1]{0}', space=sflag, size = 0x4, scoped, tag = 'scoped memory for decoder_decode.1']
    #allocation6 [shape = 's32[1]{0}', space=sflag, size = 0x4, scoped, tag = 'scoped memory for decoder_decode.1']
    #allocation7 [shape = 'u8[8192]{0}', space=vmem, size = 0x2000, scoped, tag = 'input window, operand 2, single buffered']
    #allocation8 [shape = 's32[1]{0}', space=sflag, size = 0x4, scoped, tag = 'scoped memory for decoder_decode.1']
    #allocation9 [shape = 'u8[8192]{0}', space=vmem, size = 0x2000, scoped, tag = 'input window, operand 8, single buffered']
    #allocation10 [shape = 'u8[4096]{0}', space=vmem, size = 0x1000, scoped, tag = 'output window, operand 0, single buffered']
    #allocation11 [shape = 'u8[8192]{0}', space=vmem, size = 0x2000, scoped, tag = 'output window, operand 1, single buffered']
    #allocation12 [shape = 's32[1]{0}', space=sflag, size = 0x4, scoped, tag = 'scoped memory for decoder_decode.1']
    #allocation13 [shape = 'u8[8192]{0}', space=vmem, size = 0x2000, scoped, tag = 'output window, operand 2, single buffered']
    %18 = vsyncpa [#allocation5], 0
    %19 = vsyncpa [#allocation8], 0
    %20 = vsyncpa [#allocation6], 0
    %21 = vsyncpa [#allocation12], 0
    // Predicated region
    $region2: #{decoder_decode.1} parent=1 // pred_check
      _
    $region3: #{decoder_decode.1} parent=1 // pred_check_branch
      %23 = sbr.rel (0) target = $region5
    $region4: #{decoder_decode.1} parent=1 // pred_region
      _
    $region5: #{decoder_decode.1} parent=1 // pred_fallthru
      _
    // Predicated region
    $region6: #{decoder_decode.1} parent=1 // pred_check
      _
    $region7: #{decoder_decode.1} parent=1 // pred_check_branch
      %25 = sbr.rel (0) target = $region9
    $region8: #{decoder_decode.1} parent=1 // pred_region
      %s27 = ssub.s32 256, 256
      %28 = vsyncadd [#allocation5], %s27
      %s29 = sshll.u32 [#allocation4], 4
      %s30 = int_to_ptr.vmem [resolvable:$true] %s29
      %35 = dma.hbm_to_vmem [thread:$0]  %s1, 256, %s30, [#allocation5], 128, 128, 8
    $region9: #{decoder_decode.1} parent=1 // pred_fallthru
      _
    // Predicated region
    $region10: #{decoder_decode.1} parent=1 // pred_check
      _
    $region11: #{decoder_decode.1} parent=1 // pred_check_branch
      %37 = sbr.rel (0) target = $region13
    $region12: #{decoder_decode.1} parent=1 // pred_region
      %s39 = ssub.s32 256, 256
      %40 = vsyncadd [#allocation8], %s39
      %s41 = sshll.u32 [#allocation7], 4
      %s42 = int_to_ptr.vmem [resolvable:$true] %s41
      %47 = dma.hbm_to_vmem [thread:$0]  %s2, 256, %s42, [#allocation8], 128, 128, 8
    $region13: #{decoder_decode.1} parent=1 // pred_fallthru
      _
    // Predicated region
    $region14: #{decoder_decode.1} parent=1 // pred_check
      _
    $region15: #{decoder_decode.1} parent=1 // pred_check_branch
      %49 = sbr.rel (0) target = $region17
    $region16: #{decoder_decode.1} parent=1 // pred_region
      _
    $region17: #{decoder_decode.1} parent=1 // pred_fallthru
      _
    // Predicated region
    $region18: #{decoder_decode.1} parent=1 // pred_check
      _
    $region19: #{decoder_decode.1} parent=1 // pred_check_branch
      %51 = sbr.rel (0) target = $region21
    $region20: #{decoder_decode.1} parent=1 // pred_region
      _
    $region21: #{decoder_decode.1} parent=1 // pred_fallthru
      _
    // Predicated region
    $region22: #{decoder_decode.1} parent=1 // pred_check
      _
    $region23: #{decoder_decode.1} parent=1 // pred_check_branch
      %53 = sbr.rel (0) target = $region25
    $region24: #{decoder_decode.1} parent=1 // pred_region
      _
    $region25: #{decoder_decode.1} parent=1 // pred_fallthru
      _
    // Predicated region
    $region26: #{decoder_decode.1} parent=1 // pred_check
      _
    $region27: #{decoder_decode.1} parent=1 // pred_check_branch
      %55 = sbr.rel (0) target = $region29
    $region28: #{decoder_decode.1} parent=1 // pred_region
      _
    $region29: #{decoder_decode.1} parent=1 // pred_fallthru
      _
    // Predicated region
    $region30: #{decoder_decode.1} parent=1 // pred_check
      _
    $region31: #{decoder_decode.1} parent=1 // pred_check_branch
      %57 = sbr.rel (0) target = $region33
    $region32: #{decoder_decode.1} parent=1 // pred_region
      _
    $region33: #{decoder_decode.1} parent=1 // pred_fallthru
      _
    // Predicated region
    $region34: #{decoder_decode.1} parent=1 // pred_check
      _
    $region35: #{decoder_decode.1} parent=1 // pred_check_branch
      %59 = sbr.rel (0) target = $region37
    $region36: #{decoder_decode.1} parent=1 // pred_region
      %s61 = ssub.s32 256, 256
      %62 = vsyncadd [#allocation8], %s61
      %s63 = sshll.u32 [#allocation9], 4
      %s64 = int_to_ptr.vmem [resolvable:$true] %s63
      %69 = dma.hbm_to_vmem [thread:$0]  %s8, 256, %s64, [#allocation8], 64, 64, 4
    $region37: #{decoder_decode.1} parent=1 // pred_fallthru
      _
    // Predicated region
    $region38: #{decoder_decode.1} parent=1 // pred_check
      _
    $region39: #{decoder_decode.1} parent=1 // pred_check_branch
      %71 = sbr.rel (0) target = $region41
    $region40: #{decoder_decode.1} parent=1 // pred_region
      _
    $region41: #{decoder_decode.1} parent=1 // pred_fallthru
      _
    // Predicated region
    $region42: #{decoder_decode.1} parent=1 // pred_check
      _
    $region43: #{decoder_decode.1} parent=1 // pred_check_branch
      %73 = sbr.rel (0) target = $region45
    $region44: #{decoder_decode.1} parent=1 // pred_region
      %74 = dma.done [#allocation5], 256
    $region45: #{decoder_decode.1} parent=1 // pred_fallthru
      _
    // Predicated region
    $region46: #{decoder_decode.1} parent=1 // pred_check
      _
    $region47: #{decoder_decode.1} parent=1 // pred_check_branch
      %76 = sbr.rel (0) target = $region49
    $region48: #{decoder_decode.1} parent=1 // pred_region
      %77 = dma.done [#allocation8], 256
    $region49: #{decoder_decode.1} parent=1 // pred_fallthru
      _
    // Predicated region
    $region50: #{decoder_decode.1} parent=1 // pred_check
      _
    $region51: #{decoder_decode.1} parent=1 // pred_check_branch
      %79 = sbr.rel (0) target = $region53
    $region52: #{decoder_decode.1} parent=1 // pred_region
      %80 = dma.done [#allocation8], 256
    $region53: #{decoder_decode.1} parent=1 // pred_fallthru
      _
    %p82 = scmp.eq.s32.totalorder 0, 0
    // Predicated region
    $region54: #{decoder_decode.1} parent=1 // pred_check
      %p83 = pneg %p82
    $region55: #{decoder_decode.1} parent=1 // pred_check_branch
      %85 = sbr.rel (%p83) target = $region57
    $region56: #{decoder_decode.1} parent=1 // pred_region
      %v86 = vld [vmem:[#allocation4] sm:$0xff]
      %v87 = vld [vmem:[#allocation4 + $0x8] sm:$0xff]
      %vm88 = vcmask 261120
      %89 = vst.msk [vmem:[#allocation2] sm:$0xff] %vm88, %v86
      %90 = vst.msk [vmem:[#allocation2 + $0x8] sm:$0xff] %vm88, %v87
      %v91 = vld [vmem:[#allocation7] sm:$0xff]
      %v92 = vld [vmem:[#allocation7 + $0x8] sm:$0xff]
      %93 = vst.msk [vmem:[#allocation3] sm:$0xff] %vm88, %v91
      %94 = vst.msk [vmem:[#allocation3 + $0x8] sm:$0xff] %vm88, %v92
    $region57: #{decoder_decode.1} parent=1 // pred_fallthru
      _
    %v95 = vld [vmem:[#allocation2] sm:$0xff]
    %v96 = vld [vmem:[#allocation3] sm:$0xff]
    %s97 = scalar_lea.vmem [#allocation2], 8
    %v98 = vld [vmem:[%s97] sm:$0xff]
    %s99 = scalar_lea.vmem [#allocation3], 8
    %v100 = vld [vmem:[%s99] sm:$0xff]
    %v101 = vld [vmem:[%s0] sm:$0xff]
    %v102 = vlaneseq
    %v103 = vand.u32 %v102, 127
    %104 = vset.pattern.permute.xlu0 0
    %105 = vperm.xlu0 %104, %v101
    %v106 = vpop.permute.xlu0 %105
    %vm107 = vcmp.eq.s32.totalorder %v106, %v103
    %v108 = vsel %vm107, 1, 0
    %v109 = vcvt.s32.f32 %v108
    %v110 = vpack.c.bf16 %v109, %v109
    %v111 = vld [vmem:[%s3] sm:$0xf]
    %v112 = vld [vmem:[%s3 + $0x4] sm:$0xf]
    %v113 = vld [vmem:[%s3 + $0x8] sm:$0xf]
    %v114 = vld [vmem:[%s3 + $0xc] sm:$0xf]
    %v115 = vld [vmem:[%s3 + $0x10] sm:$0xf]
    %v116 = vld [vmem:[%s3 + $0x14] sm:$0xf]
    %v117 = vld [vmem:[%s3 + $0x18] sm:$0xf]
    %v118 = vld [vmem:[%s3 + $0x1c] sm:$0xf]
    %v127 = vunpack.c.l.b16 %v111
    %v128 = vunpack.c.l.b16 %v112
    %v129 = vunpack.c.l.b16 %v113
    %v130 = vunpack.c.l.b16 %v114
    %v131 = vunpack.c.l.b16 %v115
    %v132 = vunpack.c.l.b16 %v116
    %v133 = vunpack.c.l.b16 %v117
    %v134 = vunpack.c.l.b16 %v118
    %v135 = vpack.c.b16 %v128, %v127
    %v136 = vpack.c.b16 %v130, %v129
    %v137 = vpack.c.b16 %v132, %v131
    %v138 = vpack.c.b16 %v134, %v133
    %vm143 = vcmask 523264
    %v145 = vsel %vm143, %v110, 0
    %147 = vmatprep.subr.bf16.mxu0 0
    %148 = vmatpush1.bf16.msra.mxu0 %v135
    %149 = vmatprep.subr.bf16.mxu0 0
    %150 = vmatpush1.bf16.msra.mxu0 %v136
    %151 = vmatprep.subr.bf16.mxu0 0
    %152 = vmatpush1.bf16.msra.mxu0 %v137
    %153 = vmatprep.subr.bf16.mxu0 0
    %154 = vmatpush1.bf16.msra.mxu0 %v138
    %155 = vmatprep.subr.bf16.mxu0 0
    %156 = vmatpush1.bf16.msra.mxu0 0
    %157 = vmatprep.subr.bf16.mxu0 0
    %158 = vmatpush1.bf16.msra.mxu0 0
    %159 = vmatprep.subr.bf16.mxu0 0
    %160 = vmatpush1.bf16.msra.mxu0 0
    %161 = vmatprep.subr.bf16.mxu0 0
    %162 = vmatpush1.bf16.msra.mxu0 0
    %163 = vmatprep.subr.bf16.mxu0 0
    %164 = vmatpush1.bf16.msra.mxu0 0
    %165 = vmatprep.subr.bf16.mxu0 0
    %166 = vmatpush1.bf16.msra.mxu0 0
    %167 = vmatprep.subr.bf16.mxu0 0
    %168 = vmatpush1.bf16.msra.mxu0 0
    %169 = vmatprep.subr.bf16.mxu0 0
    %170 = vmatpush1.bf16.msra.mxu0 0
    %171 = vmatprep.subr.bf16.mxu0 0
    %172 = vmatpush1.bf16.msra.mxu0 0
    %173 = vmatprep.subr.bf16.mxu0 0
    %174 = vmatpush1.bf16.msra.mxu0 0
    %175 = vmatprep.subr.bf16.mxu0 0
    %176 = vmatpush1.bf16.msra.mxu0 0
    %177 = vmatprep.subr.bf16.mxu0 0
    %178 = vmatpush1.bf16.msra.mxu0 0
    %179 = vmatprep.mubr.bf16.mxu0 0
    %180 = vmatmul.mubr.bf16.gmra.mrb[0].mxu0 %v145
    %v181 = vpop.f32.mrb[0].mxu0
    %v182 = vadd.f32 0.0, %v181
    %v183 = vpop.f32.mrb[0].mxu0
    %v184 = vpop.f32.mrb[0].mxu0
    %v185 = vpop.f32.mrb[0].mxu0
    %186 = vdwg.mxu0
    %188 = vrot.lane.b32.xlu0 %v95, 32
    %v189 = vpop.permute.xlu0 %188
    %vm191 = vcmask 261120
    %v192 = vsel %vm191, %v182, %v189
    %v193 = vpack.c.bf16 %v192, %v192
    %v194 = vld [vmem:[%s4] sm:$0xf]
    %v195 = vld [vmem:[%s4 + $0x4] sm:$0xf]
    %v196 = vld [vmem:[%s4 + $0x8] sm:$0xf]
    %v197 = vld [vmem:[%s4 + $0xc] sm:$0xf]
    %v198 = vld [vmem:[%s4 + $0x10] sm:$0xf]
    %v199 = vld [vmem:[%s4 + $0x14] sm:$0xf]
    %v200 = vld [vmem:[%s4 + $0x18] sm:$0xf]
    %v201 = vld [vmem:[%s4 + $0x1c] sm:$0xf]
    %v202 = vld [vmem:[%s5] sm:$0x1]
    %v204 = vlaneseq
    %v205 = vshrl.u32 %v204, 7
    %v206 = vsub.s32 0, %v205
    %v207 = vrot.slane %v202, %v206
    %v217 = vunpack.c.l.b16 %v194
    %v218 = vunpack.c.l.b16 %v195
    %v219 = vunpack.c.l.b16 %v196
    %v220 = vunpack.c.l.b16 %v197
    %v221 = vunpack.c.l.b16 %v198
    %v222 = vunpack.c.l.b16 %v199
    %v223 = vunpack.c.l.b16 %v200
    %v224 = vunpack.c.l.b16 %v201
    %v225 = vpack.c.b16 %v218, %v217
    %v226 = vpack.c.b16 %v220, %v219
    %v227 = vpack.c.b16 %v222, %v221
    %v228 = vpack.c.b16 %v224, %v223
    %v234 = vsel %vm143, %v193, 0
    %236 = vmatprep.subr.bf16.mxu0 0
    %237 = vmatpush1.bf16.msra.mxu0 %v225
    %238 = vmatprep.subr.bf16.mxu0 0
    %239 = vmatpush1.bf16.msra.mxu0 %v226
    %240 = vmatprep.subr.bf16.mxu0 0
    %241 = vmatpush1.bf16.msra.mxu0 %v227
    %242 = vmatprep.subr.bf16.mxu0 0
    %243 = vmatpush1.bf16.msra.mxu0 %v228
    %244 = vmatprep.subr.bf16.mxu0 0
    %245 = vmatpush1.bf16.msra.mxu0 0
    %246 = vmatprep.subr.bf16.mxu0 0
    %247 = vmatpush1.bf16.msra.mxu0 0
    %248 = vmatprep.subr.bf16.mxu0 0
    %249 = vmatpush1.bf16.msra.mxu0 0
    %250 = vmatprep.subr.bf16.mxu0 0
    %251 = vmatpush1.bf16.msra.mxu0 0
    %252 = vmatprep.subr.bf16.mxu0 0
    %253 = vmatpush1.bf16.msra.mxu0 0
    %254 = vmatprep.subr.bf16.mxu0 0
    %255 = vmatpush1.bf16.msra.mxu0 0
    %256 = vmatprep.subr.bf16.mxu0 0
    %257 = vmatpush1.bf16.msra.mxu0 0
    %258 = vmatprep.subr.bf16.mxu0 0
    %259 = vmatpush1.bf16.msra.mxu0 0
    %260 = vmatprep.subr.bf16.mxu0 0
    %261 = vmatpush1.bf16.msra.mxu0 0
    %262 = vmatprep.subr.bf16.mxu0 0
    %263 = vmatpush1.bf16.msra.mxu0 0
    %264 = vmatprep.subr.bf16.mxu0 0
    %265 = vmatpush1.bf16.msra.mxu0 0
    %266 = vmatprep.subr.bf16.mxu0 0
    %267 = vmatpush1.bf16.msra.mxu0 0
    %268 = vmatprep.mubr.bf16.mxu0 0
    %269 = vmatmul.mubr.bf16.gmra.mrb[0].mxu0 %v234
    %v270 = vpop.f32.mrb[0].mxu0
    %v271 = vadd.f32 %v207, %v270
    %v272 = vpop.f32.mrb[0].mxu0
    %v273 = vpop.f32.mrb[0].mxu0
    %v274 = vpop.f32.mrb[0].mxu0
    %275 = vdwg.mxu0
    %v276 = vxor.u32 %v271, 2147483648
    %v277 = vmul.f32 %v276, 1.442695
    %v278 = vpow.pop %v277
    %v279 = vadd.f32 %v278, 1.0
    %v280 = vrcp.pop %v279
    %v281 = vmul.f32 1.0, %v280
    %v282 = vtanh.pop %v271
    %284 = vrot.lane.b32.xlu0 %v96, 32
    %v285 = vpop.permute.xlu0 %284
    %v287 = vmul.f32 %v281, %v285
    %289 = vrot.lane.b32.xlu0 %v282, 64
    %v290 = vpop.permute.xlu0 %289
    %v292 = vmul.f32 %v281, %v290
    %294 = vrot.lane.b32.xlu0 %v292, 32
    %v295 = vpop.permute.xlu0 %294
    %v297 = vadd.f32 %v287, %v295
    %v298 = vtanh.pop %v297
    %300 = vrot.lane.b32.xlu0 %v298, 64
    %v301 = vpop.permute.xlu0 %300
    %v303 = vmul.f32 %v281, %v301
    %305 = vrot.lane.b32.xlu0 %v303, 32
    %v306 = vpop.permute.xlu0 %305
    %309 = vrot.lane.b32.xlu0 %v98, 32
    %v310 = vpop.permute.xlu0 %309
    %v312 = vsel %vm191, %v306, %v310
    %v313 = vpack.c.bf16 %v312, %v312
    %v314 = vld [vmem:[%s6] sm:$0xf]
    %v315 = vld [vmem:[%s6 + $0x4] sm:$0xf]
    %v316 = vld [vmem:[%s6 + $0x8] sm:$0xf]
    %v317 = vld [vmem:[%s6 + $0xc] sm:$0xf]
    %v318 = vld [vmem:[%s6 + $0x10] sm:$0xf]
    %v319 = vld [vmem:[%s6 + $0x14] sm:$0xf]
    %v320 = vld [vmem:[%s6 + $0x18] sm:$0xf]
    %v321 = vld [vmem:[%s6 + $0x1c] sm:$0xf]
    %v322 = vld [vmem:[%s7] sm:$0x1]
    %v324 = vlaneseq
    %v325 = vshrl.u32 %v324, 7
    %v326 = vsub.s32 0, %v325
    %v327 = vrot.slane %v322, %v326
    %v337 = vunpack.c.l.b16 %v314
    %v338 = vunpack.c.l.b16 %v315
    %v339 = vunpack.c.l.b16 %v316
    %v340 = vunpack.c.l.b16 %v317
    %v341 = vunpack.c.l.b16 %v318
    %v342 = vunpack.c.l.b16 %v319
    %v343 = vunpack.c.l.b16 %v320
    %v344 = vunpack.c.l.b16 %v321
    %v345 = vpack.c.b16 %v338, %v337
    %v346 = vpack.c.b16 %v340, %v339
    %v347 = vpack.c.b16 %v342, %v341
    %v348 = vpack.c.b16 %v344, %v343
    %v354 = vsel %vm143, %v313, 0
    %356 = vmatprep.subr.bf16.mxu0 0
    %357 = vmatpush1.bf16.msra.mxu0 %v345
    %358 = vmatprep.subr.bf16.mxu0 0
    %359 = vmatpush1.bf16.msra.mxu0 %v346
    %360 = vmatprep.subr.bf16.mxu0 0
    %361 = vmatpush1.bf16.msra.mxu0 %v347
    %362 = vmatprep.subr.bf16.mxu0 0
    %363 = vmatpush1.bf16.msra.mxu0 %v348
    %364 = vmatprep.subr.bf16.mxu0 0
    %365 = vmatpush1.bf16.msra.mxu0 0
    %366 = vmatprep.subr.bf16.mxu0 0
    %367 = vmatpush1.bf16.msra.mxu0 0
    %368 = vmatprep.subr.bf16.mxu0 0
    %369 = vmatpush1.bf16.msra.mxu0 0
    %370 = vmatprep.subr.bf16.mxu0 0
    %371 = vmatpush1.bf16.msra.mxu0 0
    %372 = vmatprep.subr.bf16.mxu0 0
    %373 = vmatpush1.bf16.msra.mxu0 0
    %374 = vmatprep.subr.bf16.mxu0 0
    %375 = vmatpush1.bf16.msra.mxu0 0
    %376 = vmatprep.subr.bf16.mxu0 0
    %377 = vmatpush1.bf16.msra.mxu0 0
    %378 = vmatprep.subr.bf16.mxu0 0
    %379 = vmatpush1.bf16.msra.mxu0 0
    %380 = vmatprep.subr.bf16.mxu0 0
    %381 = vmatpush1.bf16.msra.mxu0 0
    %382 = vmatprep.subr.bf16.mxu0 0
    %383 = vmatpush1.bf16.msra.mxu0 0
    %384 = vmatprep.subr.bf16.mxu0 0
    %385 = vmatpush1.bf16.msra.mxu0 0
    %386 = vmatprep.subr.bf16.mxu0 0
    %387 = vmatpush1.bf16.msra.mxu0 0
    %388 = vmatprep.mubr.bf16.mxu0 0
    %389 = vmatmul.mubr.bf16.gmra.mrb[0].mxu0 %v354
    %v390 = vpop.f32.mrb[0].mxu0
    %v391 = vadd.f32 %v327, %v390
    %v392 = vpop.f32.mrb[0].mxu0
    %v393 = vpop.f32.mrb[0].mxu0
    %v394 = vpop.f32.mrb[0].mxu0
    %395 = vdwg.mxu0
    %v396 = vxor.u32 %v391, 2147483648
    %v397 = vmul.f32 %v396, 1.442695
    %v398 = vpow.pop %v397
    %v399 = vadd.f32 %v398, 1.0
    %v400 = vrcp.pop %v399
    %v401 = vmul.f32 1.0, %v400
    %v402 = vtanh.pop %v391
    %404 = vrot.lane.b32.xlu0 %v100, 32
    %v405 = vpop.permute.xlu0 %404
    %v407 = vmul.f32 %v401, %v405
    %409 = vrot.lane.b32.xlu0 %v402, 64
    %v410 = vpop.permute.xlu0 %409
    %v412 = vmul.f32 %v401, %v410
    %414 = vrot.lane.b32.xlu0 %v412, 32
    %v415 = vpop.permute.xlu0 %414
    %v417 = vadd.f32 %v407, %v415
    %v418 = vtanh.pop %v417
    %420 = vrot.lane.b32.xlu0 %v418, 64
    %v421 = vpop.permute.xlu0 %420
    %v423 = vmul.f32 %v401, %v421
    %424 = vst.msk [vmem:[#allocation2] sm:$0xff] %vm191, %v306
    %426 = vrot.lane.b32.xlu0 %v423, 32
    %v427 = vpop.permute.xlu0 %426
    %429 = vst.msk [vmem:[%s97] sm:$0xff] %vm191, %v427
    %431 = vrot.lane.b32.xlu0 %v297, 96
    %v432 = vpop.permute.xlu0 %431
    %434 = vst.msk [vmem:[#allocation3] sm:$0xff] %vm191, %v432
    %436 = vrot.lane.b32.xlu0 %v417, 96
    %v437 = vpop.permute.xlu0 %436
    %439 = vst.msk [vmem:[%s99] sm:$0xff] %vm191, %v437
    %v440 = vpack.c.bf16 %v423, %v423
    %v441 = vld [vmem:[#allocation9] sm:$0xf]
    %v442 = vld [vmem:[#allocation9 + $0x4] sm:$0xf]
    %v443 = vld [vmem:[#allocation9 + $0x8] sm:$0xf]
    %v444 = vld [vmem:[#allocation9 + $0xc] sm:$0xf]
    %v445 = vld [vmem:[%s9] sm:$0x1]
    %v447 = vlaneseq
    %v448 = vshrl.u32 %v447, 7
    %v449 = vsub.s32 0, %v448
    %v450 = vrot.slane %v445, %v449
    %453 = vrot.lane.b32.xlu0 %v440, 32
    %v454 = vpop.permute.xlu0 %453
    %v459 = vunpack.c.l.b16 %v441
    %v460 = vunpack.c.l.b16 %v442
    %v461 = vunpack.c.l.b16 %v443
    %v462 = vunpack.c.l.b16 %v444
    %v463 = vpack.c.b16 %v460, %v459
    %v464 = vpack.c.b16 %v462, %v461
    %v468 = vsel %vm191, %v454, 0
    %470 = vmatprep.subr.bf16.mxu0 0
    %471 = vmatpush1.bf16.msra.mxu0 %v463
    %472 = vmatprep.subr.bf16.mxu0 0
    %473 = vmatpush1.bf16.msra.mxu0 %v464
    %474 = vmatprep.subr.bf16.mxu0 0
    %475 = vmatpush1.bf16.msra.mxu0 0
    %476 = vmatprep.subr.bf16.mxu0 0
    %477 = vmatpush1.bf16.msra.mxu0 0
    %478 = vmatprep.subr.bf16.mxu0 0
    %479 = vmatpush1.bf16.msra.mxu0 0
    %480 = vmatprep.subr.bf16.mxu0 0
    %481 = vmatpush1.bf16.msra.mxu0 0
    %482 = vmatprep.subr.bf16.mxu0 0
    %483 = vmatpush1.bf16.msra.mxu0 0
    %484 = vmatprep.subr.bf16.mxu0 0
    %485 = vmatpush1.bf16.msra.mxu0 0
    %486 = vmatprep.subr.bf16.mxu0 0
    %487 = vmatpush1.bf16.msra.mxu0 0
    %488 = vmatprep.subr.bf16.mxu0 0
    %489 = vmatpush1.bf16.msra.mxu0 0
    %490 = vmatprep.subr.bf16.mxu0 0
    %491 = vmatpush1.bf16.msra.mxu0 0
    %492 = vmatprep.subr.bf16.mxu0 0
    %493 = vmatpush1.bf16.msra.mxu0 0
    %494 = vmatprep.subr.bf16.mxu0 0
    %495 = vmatpush1.bf16.msra.mxu0 0
    %496 = vmatprep.subr.bf16.mxu0 0
    %497 = vmatpush1.bf16.msra.mxu0 0
    %498 = vmatprep.subr.bf16.mxu0 0
    %499 = vmatpush1.bf16.msra.mxu0 0
    %500 = vmatprep.subr.bf16.mxu0 0
    %501 = vmatpush1.bf16.msra.mxu0 0
    %502 = vmatprep.mubr.bf16.mxu0 0
    %503 = vmatmul.mubr.bf16.gmra.mrb[0].mxu0 %v468
    %v504 = vpop.f32.mrb[0].mxu0
    %v505 = vadd.f32 %v450, %v504
    %v506 = vpop.f32.mrb[0].mxu0
    %v507 = vpop.f32.mrb[0].mxu0
    %v508 = vpop.f32.mrb[0].mxu0
    %509 = vdwg.mxu0
    %510 = vst.msk [vmem:[#allocation10] sm:$0xff] %vm143, %v505
    // Predicated region
    $region58: #{decoder_decode.1} parent=1 // pred_check
      %p511 = pneg %p82
    $region59: #{decoder_decode.1} parent=1 // pred_check_branch
      %513 = sbr.rel (%p511) target = $region61
    $region60: #{decoder_decode.1} parent=1 // pred_region
      %v514 = vld [vmem:[#allocation2] sm:$0xff]
      %v515 = vld [vmem:[#allocation2 + $0x8] sm:$0xff]
      %516 = vst.msk [vmem:[#allocation11] sm:$0xff] %vm191, %v514
      %517 = vst.msk [vmem:[#allocation11 + $0x8] sm:$0xff] %vm191, %v515
      %v518 = vld [vmem:[#allocation3] sm:$0xff]
      %v519 = vld [vmem:[#allocation3 + $0x8] sm:$0xff]
      %520 = vst.msk [vmem:[#allocation13] sm:$0xff] %vm191, %v518
      %521 = vst.msk [vmem:[#allocation13 + $0x8] sm:$0xff] %vm191, %v519
    $region61: #{decoder_decode.1} parent=1 // pred_fallthru
      _
    // Predicated region
    $region62: #{decoder_decode.1} parent=1 // pred_check
      _
    $region63: #{decoder_decode.1} parent=1 // pred_check_branch
      %523 = sbr.rel (0) target = $region65
    $region64: #{decoder_decode.1} parent=1 // pred_region
      %s525 = ssub.s32 128, 128
      %526 = vsyncadd [#allocation6], %s525
      %s528 = sshll.u32 [#allocation10], 4
      %s529 = int_to_ptr.vmem [resolvable:$true] %s528
      %531 = dma.vmem_to_hbm [thread:$0]  %s529, 128, %s10, [#allocation6]
    $region65: #{decoder_decode.1} parent=1 // pred_fallthru
      _
    // Predicated region
    $region66: #{decoder_decode.1} parent=1 // pred_check
      _
    $region67: #{decoder_decode.1} parent=1 // pred_check_branch
      %533 = sbr.rel (0) target = $region69
    $region68: #{decoder_decode.1} parent=1 // pred_region
      %s535 = ssub.s32 256, 256
      %536 = vsyncadd [#allocation12], %s535
      %s537 = sshll.u32 [#allocation11], 4
      %s538 = int_to_ptr.vmem [resolvable:$true] %s537
      %543 = dma.vmem_to_hbm [thread:$0]  %s538, 256, %s11, [#allocation12], 128, 128, 8
    $region69: #{decoder_decode.1} parent=1 // pred_fallthru
      _
    // Predicated region
    $region70: #{decoder_decode.1} parent=1 // pred_check
      _
    $region71: #{decoder_decode.1} parent=1 // pred_check_branch
      %545 = sbr.rel (0) target = $region73
    $region72: #{decoder_decode.1} parent=1 // pred_region
      %s547 = ssub.s32 256, 256
      %548 = vsyncadd [#allocation12], %s547
      %s549 = sshll.u32 [#allocation13], 4
      %s550 = int_to_ptr.vmem [resolvable:$true] %s549
      %555 = dma.vmem_to_hbm [thread:$0]  %s550, 256, %s12, [#allocation12], 128, 128, 8
    $region73: #{decoder_decode.1} parent=1 // pred_fallthru
      _
    // Predicated region
    $region74: #{decoder_decode.1} parent=1 // pred_check
      _
    $region75: #{decoder_decode.1} parent=1 // pred_check_branch
      %557 = sbr.rel (0) target = $region77
    $region76: #{decoder_decode.1} parent=1 // pred_region
      %558 = dma.done [#allocation6], 128
    $region77: #{decoder_decode.1} parent=1 // pred_fallthru
      _
    // Predicated region
    $region78: #{decoder_decode.1} parent=1 // pred_check
      _
    $region79: #{decoder_decode.1} parent=1 // pred_check_branch
      %560 = sbr.rel (0) target = $region81
    $region80: #{decoder_decode.1} parent=1 // pred_region
      %561 = dma.done [#allocation12], 256
    $region81: #{decoder_decode.1} parent=1 // pred_fallthru
      _
    // Predicated region
    $region82: #{decoder_decode.1} parent=1 // pred_check
      _
    $region83: #{decoder_decode.1} parent=1 // pred_check_branch
      %563 = sbr.rel (0) target = $region85
    $region84: #{decoder_decode.1} parent=1 // pred_region
      %564 = dma.done [#allocation12], 256
    $region85: #{decoder_decode.1} parent=1 // pred_fallthru
      _
    %565 = vsyncpa [#allocation5], 1
    %566 = vsyncpa [#allocation8], 1
    %567 = vsyncpa [#allocation6], 1
    %568 = vsyncpa [#allocation12], 1

</llo_original>
